<compile_context>
chip_gen: v7x
topology: tpu7x:2x2x1
jax: 0.10.0
libtpu: 0.0.40
codegen_flags: <defaults>
</compile_context>

<pallas_src>
import jax
import jax.numpy as jnp
from jax.experimental import pallas as pl
from jax.experimental.pallas import tpu as pltpu


_SMALL_BATCH = 256   # grid-less latency-path threshold (kept low so mid-size batches
                     # still take the grid path and use both v7x TensorCores)
_MAX_TILE = 2048     # cap per-step rows so double-buffered tiles stay << 32 MiB scoped VMEM


def _fused_linear_kernel(x_ref, w_ref, b_ref, o_ref):
    # Single MXU matmul (l1 and l2 folded offline) + broadcast bias add on the VPU.
    y = jnp.dot(x_ref[...], w_ref[...], preferred_element_type=jnp.float32)
    o_ref[...] = (y + b_ref[...]).astype(o_ref.dtype)


def prepare_params(w1, b1, w2, b2, compute_dtype=jnp.float32):
    """Fold the two activation-free Linear layers into one (run once, offline).

    NOTE: w1 must be [input_size, hidden_size] and w2 [hidden_size, output_size]
    — i.e. the TRANSPOSE of torch nn.Linear's [out_features, in_features]
    layout — so the kernel computes x @ W directly.

    Returns:
      w_fused: [I, O] in `compute_dtype`  (= w1 @ w2, folded in f32)
      b_fused: [1, O] in f32              (= b1 @ w2 + b2)
    """
    in_size, hid = w1.shape
    hid2, out_size = w2.shape
    assert hid2 == hid, "w1/w2 inner dims mismatch (did you pass the torch [out,in] layout?)"
    w1f, w2f = w1.astype(jnp.float32), w2.astype(jnp.float32)
    w_fused = (w1f @ w2f).astype(compute_dtype)                       # [I, O]
    b_fused = (b1.astype(jnp.float32) @ w2f
               + b2.astype(jnp.float32)).reshape(1, out_size)         # [1, O], f32
    return w_fused, b_fused


def _pick_batch_tile(batch):
    # >=2 grid steps (v7x megacore sharding), rows a multiple of 8 (sublanes),
    # capped at _MAX_TILE so per-core double buffers stay well under scoped VMEM.
    tile = min(_MAX_TILE, pl.cdiv(batch, 2))
    return max(8, ((tile + 7) // 8) * 8)


def kernel_learner_forward(x, w_fused, b_fused, *, batch_tile=None):
    """Pallas forward for KernelLearner: l2(l1(x)) with the layers folded offline."""
    batch, in_size = x.shape
    assert w_fused.shape[0] == in_size
    out_size = w_fused.shape[1]
    out_dtype = x.dtype

    if batch <= _SMALL_BATCH and batch_tile is None:
        # Latency path: no grid -> no pipeline machinery, whole problem in VMEM.
        return pl.pallas_call(
            _fused_linear_kernel,
            out_shape=jax.ShapeDtypeStruct((batch, out_size), out_dtype),
            in_specs=[pl.BlockSpec(memory_space=pltpu.MemorySpace.VMEM)] * 3,
            out_specs=pl.BlockSpec(memory_space=pltpu.MemorySpace.VMEM),
        )(x, w_fused, b_fused)

    # Throughput path: tile the batch, keep W/b resident, batch axis parallel.
    tile = batch_tile if batch_tile is not None else _pick_batch_tile(batch)
    nb = pl.cdiv(batch, tile)   # ragged final block: Pallas masks OOB rows (no jnp.pad)
    return pl.pallas_call(
        _fused_linear_kernel,
        out_shape=jax.ShapeDtypeStruct((batch, out_size), out_dtype),
        grid=(nb,),
        in_specs=[
            pl.BlockSpec((tile, in_size), lambda i: (i, 0)),
            pl.BlockSpec(w_fused.shape, lambda i: (0, 0)),   # resident weights
            pl.BlockSpec(b_fused.shape, lambda i: (0, 0)),   # resident bias
        ],
        out_specs=pl.BlockSpec((tile, out_size), lambda i: (i, 0)),
        compiler_params=pltpu.CompilerParams(
            dimension_semantics=("parallel",)),
    )(x, w_fused, b_fused)


def init_params(key, input_size, hidden_size, output_size):
    """Deterministic init matching nn.Linear default (uniform +/- 1/sqrt(fan_in)).

    Weights are stored as [in, out] (transpose of torch's [out, in]) so the
    forward is a plain x @ W.
    """
    k1, k2, k3, k4 = jax.random.split(key, 4)
    bound1 = 1.0 / jnp.sqrt(input_size)
    bound2 = 1.0 / jnp.sqrt(hidden_size)
    w1 = jax.random.uniform(k1, (input_size, hidden_size), jnp.float32, -bound1, bound1)
    b1 = jax.random.uniform(k2, (hidden_size,), jnp.float32, -bound1, bound1)
    w2 = jax.random.uniform(k3, (hidden_size, output_size), jnp.float32, -bound2, bound2)
    b2 = jax.random.uniform(k4, (output_size,), jnp.float32, -bound2, bound2)
    return w1, b1, w2, b2


if __name__ == "__main__":
    input_size, hidden_size, output_size = 16, 32, 8
    batch = 8

    key = jax.random.PRNGKey(0)
    kx, kp = jax.random.split(key)
    x = jax.random.normal(kx, (batch, input_size), jnp.float32)
    w1, b1, w2, b2 = init_params(kp, input_size, hidden_size, output_size)

    # Reference: same semantics as the torch forward (l2(l1(x))).
    ref = (x @ w1 + b1) @ w2 + b2

    # 1) Small-batch grid-less latency path, f32 fused weights.
    w_f32, b_f32 = prepare_params(w1, b1, w2, b2)
    out = jax.block_until_ready(kernel_learner_forward(x, w_f32, b_f32))
    assert out.shape == (batch, output_size)
    assert jnp.allclose(out, ref, atol=1e-4, rtol=1e-4)

    # 2) Batch-tiled grid path with a ragged batch (no jnp.pad; final block
    #    out-of-range rows are masked by Pallas).
    xb = jax.random.normal(kx, (300, input_size), jnp.float32)
    refb = (xb @ w1 + b1) @ w2 + b2
    outb = jax.block_until_ready(
        kernel_learner_forward(xb, w_f32, b_f32, batch_tile=128))
    assert outb.shape == (300, output_size)
    assert jnp.allclose(outb, refb, atol=1e-4, rtol=1e-4)

    # 3) bf16 I/O path (v6e/v7x): bf16 x + bf16 fused weights, f32 accumulation.
    w_bf, b_bf = prepare_params(w1, b1, w2, b2, compute_dtype=jnp.bfloat16)
    out_bf = jax.block_until_ready(
        kernel_learner_forward(x.astype(jnp.bfloat16), w_bf, b_bf))
    assert out_bf.shape == (batch, output_size)
    assert jnp.allclose(out_bf.astype(jnp.float32), ref, atol=5e-2, rtol=5e-2)

    print("KERNEL_OK")
</pallas_src>

<mosaic_0001>
module attributes {stable_mosaic.version = 11 : i64} {
  func.func @_fused_linear_kernel(%arg0: memref<8x16xf32, #tpu.memory_space<vmem>>, %arg1: memref<16x8xf32, #tpu.memory_space<vmem>>, %arg2: memref<1x8xf32, #tpu.memory_space<vmem>>, %arg3: memref<8x8xf32, #tpu.memory_space<vmem>>) attributes {dimension_semantics = [], scalar_prefetch = 0 : i64, scratch_operands = 0 : i64, tpu.core_type = #tpu.core_type<tc>} {
    %c0 = arith.constant 0 : index
    %c0_0 = arith.constant 0 : index
    %0 = vector.load %arg0[%c0, %c0_0] : memref<8x16xf32, #tpu.memory_space<vmem>>, vector<8x16xf32>
    %c0_1 = arith.constant 0 : index
    %c0_2 = arith.constant 0 : index
    %1 = vector.load %arg1[%c0_1, %c0_2] : memref<16x8xf32, #tpu.memory_space<vmem>>, vector<16x8xf32>
    %cst = arith.constant dense<0.000000e+00> : vector<8x8xf32>
    %2 = tpu.matmul %0, %1, %cst {dimension_numbers = #tpu.dot_dimension_numbers<[1], [0], [0], [1], [0, 0, 1, 1], [], []>} : vector<8x16xf32>, vector<16x8xf32>, vector<8x8xf32> -> vector<8x8xf32>
    %c0_3 = arith.constant 0 : index
    %c0_4 = arith.constant 0 : index
    %3 = vector.load %arg2[%c0_3, %c0_4] : memref<1x8xf32, #tpu.memory_space<vmem>>, vector<1x8xf32>
    %4 = vector.broadcast %3 : vector<1x8xf32> to vector<8x8xf32>
    %5 = arith.addf %2, %4 : vector<8x8xf32>
    %c0_5 = arith.constant 0 : index
    %c0_6 = arith.constant 0 : index
    %6 = vector.load %arg3[%c0_5, %c0_6] : memref<8x8xf32, #tpu.memory_space<vmem>>, vector<8x8xf32>
    tpu.vector_store %arg3[%c0_5, %c0_6], %5 {strides = array<i32>} : memref<8x8xf32, #tpu.memory_space<vmem>>, vector<8x8xf32>,
    return
  }
}

</mosaic_0001>

<llo_original>
// kernel: tpu_custom_call.1
$region0: #{tpu_custom_call.1}
  #allocation0 [shape = 'u32[]', space=smem, size = 0x4, offset = 0x4, fixed_abs, tag = 'smem constant byte address 0x4 - core index']
  #allocation1 [shape = 'u32[144,128]{1,0:T(1,128)}', space=vmem, size = 0x12000, scoped, tag = 'internal scratch']
  %s0 = inlined_call_operand.vmem [shape: f32[8,16], index: 0, kind: input, shape index: {}]
  %s1 = inlined_call_operand.vmem [shape: f32[16,8], index: 1, kind: input, shape index: {}]
  %s2 = inlined_call_operand.vmem [shape: f32[1,8], index: 2, kind: input, shape index: {}]
  %s3 = inlined_call_operand.hbm [shape: f32[8,8], index: 3, kind: output, shape index: {}]
  %s4 = sld [smem:[#allocation0]]
  $region22: #{tpu_custom_call.1} parent=0
    _
  %s6 = ssub.s32 1, %s4
  %s7 = scalar_select 0, %s6, %s4
  $region1: #{tpu_custom_call.1} parent=0
    #allocation2 [shape = 'u8[4096]{0}', space=vmem, size = 0x1000, scoped, tag = 'output window, operand 0, single buffered']
    #allocation3 [shape = 's32[1]{0}', space=sflag, size = 0x4, scoped, tag = 'scoped memory for tpu_custom_call.1']
    %8 = vsyncpa [#allocation3], 0
    // Predicated region
    $region2: #{tpu_custom_call.1} parent=1 // pred_check
      _
    $region3: #{tpu_custom_call.1} parent=1 // pred_check_branch
      %10 = sbr.rel (0) target = $region5
    $region4: #{tpu_custom_call.1} parent=1 // pred_region
      _
    $region5: #{tpu_custom_call.1} parent=1 // pred_fallthru
      _
    // Predicated region
    $region6: #{tpu_custom_call.1} parent=1 // pred_check
      _
    $region7: #{tpu_custom_call.1} parent=1 // pred_check_branch
      %12 = sbr.rel (0) target = $region9
    $region8: #{tpu_custom_call.1} parent=1 // pred_region
      _
    $region9: #{tpu_custom_call.1} parent=1 // pred_fallthru
      _
    // Predicated region
    $region10: #{tpu_custom_call.1} parent=1 // pred_check
      _
    $region11: #{tpu_custom_call.1} parent=1 // pred_check_branch
      %14 = sbr.rel (0) target = $region13
    $region12: #{tpu_custom_call.1} parent=1 // pred_region
      _
    $region13: #{tpu_custom_call.1} parent=1 // pred_fallthru
      _
    %v15 = vld [vmem:[%s0] sm:$0xff]
    %v16 = vld [vmem:[%s1] sm:$0xff]
    %v17 = vld [vmem:[%s1 + $0x8] sm:$0xff]
    %v18 = vld [vmem:[%s2] sm:$0x1]
    %v20 = vlaneseq
    %v21 = vshrl.u32 %v20, 7
    %v22 = vsub.s32 0, %v21
    %v23 = vrot.slane %v18, %v22
    %vm25 = vcmask 130048
    %v27 = vsel %vm25, %v15, 0
    %29 = vmatprep.subr.mxu0 0.0
    %30 = vmatpush1.msra.mxu0 %v16
    %31 = vmatprep.subr.mxu0 0.0
    %32 = vmatpush1.msra.mxu0 %v17
    %33 = vmatprep.subr.mxu0 0.0
    %34 = vmatpush1.msra.mxu0 0.0
    %35 = vmatprep.subr.mxu0 0.0
    %36 = vmatpush1.msra.mxu0 0.0
    %37 = vmatprep.subr.mxu0 0.0
    %38 = vmatpush1.msra.mxu0 0.0
    %39 = vmatprep.subr.mxu0 0.0
    %40 = vmatpush1.msra.mxu0 0.0
    %41 = vmatprep.subr.mxu0 0.0
    %42 = vmatpush1.msra.mxu0 0.0
    %43 = vmatprep.subr.mxu0 0.0
    %44 = vmatpush1.msra.mxu0 0.0
    %45 = vmatprep.subr.mxu0 0.0
    %46 = vmatpush1.msra.mxu0 0.0
    %47 = vmatprep.subr.mxu0 0.0
    %48 = vmatpush1.msra.mxu0 0.0
    %49 = vmatprep.subr.mxu0 0.0
    %50 = vmatpush1.msra.mxu0 0.0
    %51 = vmatprep.subr.mxu0 0.0
    %52 = vmatpush1.msra.mxu0 0.0
    %53 = vmatprep.subr.mxu0 0.0
    %54 = vmatpush1.msra.mxu0 0.0
    %55 = vmatprep.subr.mxu0 0.0
    %56 = vmatpush1.msra.mxu0 0.0
    %57 = vmatprep.subr.mxu0 0.0
    %58 = vmatpush1.msra.mxu0 0.0
    %59 = vmatprep.subr.mxu0 0.0
    %60 = vmatpush1.msra.mxu0 0.0
    %61 = vmatprep.subr.mxu0 0.0
    %62 = vmatpush1.msra.mxu0 0.0
    %63 = vmatprep.subr.mxu0 0.0
    %64 = vmatpush1.msra.mxu0 0.0
    %65 = vmatprep.subr.mxu0 0.0
    %66 = vmatpush1.msra.mxu0 0.0
    %67 = vmatprep.subr.mxu0 0.0
    %68 = vmatpush1.msra.mxu0 0.0
    %69 = vmatprep.subr.mxu0 0.0
    %70 = vmatpush1.msra.mxu0 0.0
    %71 = vmatprep.subr.mxu0 0.0
    %72 = vmatpush1.msra.mxu0 0.0
    %73 = vmatprep.subr.mxu0 0.0
    %74 = vmatpush1.msra.mxu0 0.0
    %75 = vmatprep.subr.mxu0 0.0
    %76 = vmatpush1.msra.mxu0 0.0
    %77 = vmatprep.subr.mxu0 0.0
    %78 = vmatpush1.msra.mxu0 0.0
    %79 = vmatprep.subr.mxu0 0.0
    %80 = vmatpush1.msra.mxu0 0.0
    %81 = vmatprep.subr.mxu0 0.0
    %82 = vmatpush1.msra.mxu0 0.0
    %83 = vmatprep.subr.mxu0 0.0
    %84 = vmatpush1.msra.mxu0 0.0
    %85 = vmatprep.subr.mxu0 0.0
    %86 = vmatpush1.msra.mxu0 0.0
    %87 = vmatprep.subr.mxu0 0.0
    %88 = vmatpush1.msra.mxu0 0.0
    %89 = vmatprep.subr.mxu0 0.0
    %90 = vmatpush1.msra.mxu0 0.0
    %91 = vmatprep.subr.mxu0 0.0
    %92 = vmatpush1.msra.mxu0 0.0
    %93 = vmatprep.mubr.f32.mxu0 0.0
    %94 = vmatmul.mubr.f32.gmra.mrb[0].mxu0 %v27
    %v95 = vpop.f32.mrb[0].mxu0
    %v96 = vadd.f32 %v23, %v95
    %v97 = vpop.f32.mrb[0].mxu0
    %98 = vdwg.mxu0
    %vm99 = vcmask 64512
    %100 = vst.msk [vmem:[#allocation2] sm:$0xff] %vm99, %v96
    // Predicated region
    $region14: #{tpu_custom_call.1} parent=1 // pred_check
      _
    $region15: #{tpu_custom_call.1} parent=1 // pred_check_branch
      %102 = sbr.rel (0) target = $region17
    $region16: #{tpu_custom_call.1} parent=1 // pred_region
      %s104 = ssub.s32 128, 128
      %105 = vsyncadd [#allocation3], %s104
      %s107 = sshll.u32 [#allocation2], 4
      %s108 = int_to_ptr.vmem [resolvable:$true] %s107
      %110 = dma.vmem_to_hbm [thread:$0]  %s108, 128, %s3, [#allocation3]
    $region17: #{tpu_custom_call.1} parent=1 // pred_fallthru
      _
    // Predicated region
    $region18: #{tpu_custom_call.1} parent=1 // pred_check
      _
    $region19: #{tpu_custom_call.1} parent=1 // pred_check_branch
      %112 = sbr.rel (0) target = $region21
    $region20: #{tpu_custom_call.1} parent=1 // pred_region
      %113 = dma.done [#allocation3], 128
    $region21: #{tpu_custom_call.1} parent=1 // pred_fallthru
      _
    %114 = vsyncpa [#allocation3], 1

</llo_original>
